<compile_context>
chip_gen: v6e
topology: v6e:2x2x1
jax: 0.10.0
libtpu: 0.0.40
codegen_flags: <defaults>
</compile_context>

<pallas_src>
import functools

import jax
import jax.numpy as jnp
from jax import lax
from jax.experimental import pallas as pl
from jax.experimental.pallas import tpu as pltpu

_LANE = 128
_SUBLANE = 8


def _round_up(x, m):
    return ((x + m - 1) // m) * m


def cnn_kernel(x_ref, w_ref, b_ref, o_ref, *, k, l_out):
    """One row-tile of conv1d(valid) + relu + max-over-time.

    x_ref: (tile_n, W_pad, E)  bf16, channels-last, W zero-padded
    w_ref: (k*E, C_pad)        bf16, conv taps stacked along the contraction dim
    b_ref: (1, C_pad)          f32
    o_ref: (tile_n, C_pad)     f32, lane-dense (C_pad multiple of 128)
    """
    tile_n, w_pad, e = x_ref.shape
    c_pad = o_ref.shape[-1]
    l_pad = w_pad - k + 1                       # multiple of 8 by construction

    # Load the tile once; build the im2col matrix in-register by concatenating
    # the k shifted temporal windows along the channel (lane) axis.
    xv = x_ref[...]                                              # (tile_n, w_pad, E)
    x_col = jnp.concatenate(
        [xv[:, s:s + l_pad, :] for s in range(k)], axis=2)       # (tile_n, l_pad, k*E)

    # Single MXU matmul with big M (= tile_n * l_pad) and K (= k*E), f32 acc.
    # l_pad % 8 == 0, so the merge/split reshapes are layout-free.
    x2 = x_col.reshape(tile_n * l_pad, k * e)
    acc = jnp.dot(x2, w_ref[...], preferred_element_type=jnp.float32)
    acc = acc.reshape(tile_n, l_pad, c_pad)

    # Temporal positions >= l_out come from the zero padding of W; mask them
    # out of the max so they can never win.
    if l_out < l_pad:
        t = lax.broadcasted_iota(jnp.int32, acc.shape, 1)
        acc = jnp.where(t < l_out, acc, -jnp.inf)

    # Max over time first, then bias + relu (commuted: bias is constant over
    # the temporal axis and relu is monotone).
    m = jnp.max(acc, axis=1)                                     # (tile_n, c_pad)
    o_ref[...] = jnp.maximum(m + b_ref[...], 0.0).astype(o_ref.dtype)


def cnn_forward(x_nce, weight_oik, bias_o, *, tile_n=256):
    """x_nce: (N, E, W) like PyTorch Conv1d input. Returns (N, C_out)."""
    N, E, W = x_nce.shape
    c_out, e_in, k = weight_oik.shape
    assert e_in == E
    l_out = W - k + 1
    assert l_out >= 1

    c_pad = _round_up(c_out, _LANE)             # lane-dense output stores
    l_pad = _round_up(l_out, _SUBLANE)          # aligned in-kernel reshapes
    w_pad = l_pad + k - 1

    # Row tiling: big tiles amortize per-grid-step pipeline overhead, but keep
    # >= 2 grid steps when possible so both v7x TensorCores are used.
    n8 = _round_up(N, _SUBLANE)
    tile = _round_up(min(int(tile_n), n8), _SUBLANE)
    if n8 // tile < 2 and n8 >= 2 * _SUBLANE:
        tile = _round_up(max(n8 // 2, _SUBLANE), _SUBLANE)
    grid_n = -(-n8 // tile)
    n_pad = grid_n * tile

    # One fused XLA pass over x: channels-last + zero pad + bf16 cast.
    x_nwe = jnp.transpose(x_nce, (0, 2, 1)).astype(jnp.bfloat16)        # (N, W, E)
    x_nwe = jnp.pad(x_nwe, ((0, n_pad - N), (0, w_pad - W), (0, 0)))

    # Conv weight as one (k*E, C_pad) im2col matrix, bf16; bias padded to C_pad.
    w_col = jnp.transpose(weight_oik, (2, 1, 0)).astype(jnp.bfloat16)   # (k, E, C_out)
    w_col = jnp.pad(w_col, ((0, 0), (0, 0), (0, c_pad - c_out)))
    w_col = w_col.reshape(k * E, c_pad)
    b_2d = jnp.pad(bias_o.astype(jnp.float32), (0, c_pad - c_out)).reshape(1, c_pad)

    kernel = functools.partial(cnn_kernel, k=k, l_out=l_out)
    out = pl.pallas_call(
        kernel,
        out_shape=jax.ShapeDtypeStruct((n_pad, c_pad), jnp.float32),
        grid=(grid_n,),
        in_specs=[
            pl.BlockSpec((tile, w_pad, E), lambda i: (i, 0, 0)),
            pl.BlockSpec((k * E, c_pad), lambda i: (0, 0)),   # weights stay resident
            pl.BlockSpec((1, c_pad), lambda i: (0, 0)),
        ],
        out_specs=pl.BlockSpec((tile, c_pad), lambda i: (i, 0)),
        compiler_params=pltpu.CompilerParams(
            dimension_semantics=("parallel",)),
    )(x_nwe, w_col, b_2d)

    return out[:N, :c_out].astype(x_nce.dtype)


def cnn_reference(x_nce, weight_oik, bias_o):
    """Pure-JAX reference matching PyTorch Conv1d + relu + max semantics."""
    conv = lax.conv_general_dilated(
        x_nce, weight_oik,
        window_strides=(1,), padding="VALID",
        dimension_numbers=("NCW", "OIW", "NCW"))
    conv = conv + bias_o[None, :, None]
    return jnp.max(jnp.maximum(conv, 0.0), axis=-1)


if __name__ == "__main__":
    # Small shapes consistent with the module: N = b*s_len = 2*8 = 16,
    # embed_size E = 32, word length W = 16, kernel k = 5, output_size = 64.
    b, s_len = 2, 8
    N = b * s_len
    E, W, k, c_out = 32, 16, 5, 64

    key = jax.random.PRNGKey(0)
    kx, kw, kb = jax.random.split(key, 3)
    bound = 1.0 / jnp.sqrt(jnp.float32(E * k))
    x = jax.random.normal(kx, (N, E, W), dtype=jnp.float32)
    weight = jax.random.uniform(kw, (c_out, E, k), dtype=jnp.float32,
                                minval=-bound, maxval=bound)
    bias = jax.random.uniform(kb, (c_out,), dtype=jnp.float32,
                              minval=-bound, maxval=bound)

    out = jax.block_until_ready(cnn_forward(x, weight, bias))
    assert out.shape == (N, c_out), out.shape

    # Reference with the same bf16 input rounding as the kernel (f32 accumulate).
    xq = x.astype(jnp.bfloat16).astype(jnp.float32)
    wq = weight.astype(jnp.bfloat16).astype(jnp.float32)
    ref_bf16 = jax.block_until_ready(cnn_reference(xq, wq, bias))
    assert jnp.allclose(out, ref_bf16, atol=5e-3, rtol=5e-3), \
        float(jnp.max(jnp.abs(out - ref_bf16)))

    # Full-precision reference: loose tolerance covers only the bf16 input cast.
    ref_f32 = jax.block_until_ready(cnn_reference(x, weight, bias))
    assert jnp.allclose(out, ref_f32, atol=5e-2, rtol=5e-2), \
        float(jnp.max(jnp.abs(out - ref_f32)))

    print("KERNEL_OK")
</pallas_src>

<mosaic_0001>
module attributes {stable_mosaic.version = 11 : i64} {
  func.func @cnn_kernel(%arg0: i32, %arg1: memref<8x20x32xbf16, #tpu.memory_space<vmem>>, %arg2: memref<160x128xbf16, #tpu.memory_space<vmem>>, %arg3: memref<1x128xf32, #tpu.memory_space<vmem>>, %arg4: memref<8x128xf32, #tpu.memory_space<vmem>>) attributes {dimension_semantics = [#tpu.dimension_semantics<parallel>], iteration_bounds = array<i64: 2>, scalar_prefetch = 0 : i64, scratch_operands = 0 : i64, tpu.core_type = #tpu.core_type<tc>, window_params = [{transform_indices = @transform_0, window_bounds = array<i64: 8, 20, 32>}, {pipeline_mode = #tpu.pipeline_mode<synchronous>, transform_indices = @transform_1, window_bounds = array<i64: 160, 128>}, {pipeline_mode = #tpu.pipeline_mode<synchronous>, transform_indices = @transform_2, window_bounds = array<i64: 1, 128>}, {transform_indices = @transform_3, window_bounds = array<i64: 8, 128>}]} {
    %c0 = arith.constant 0 : index
    %c0_0 = arith.constant 0 : index
    %c0_1 = arith.constant 0 : index
    %0 = vector.load %arg1[%c0, %c0_0, %c0_1] : memref<8x20x32xbf16, #tpu.memory_space<vmem>>, vector<8x20x32xbf16>
    %1 = vector.extract_strided_slice %0 {offsets = [0, 0, 0], sizes = [8, 16, 32], strides = [1, 1, 1]} : vector<8x20x32xbf16> to vector<8x16x32xbf16>
    %2 = vector.extract_strided_slice %0 {offsets = [0, 1, 0], sizes = [8, 16, 32], strides = [1, 1, 1]} : vector<8x20x32xbf16> to vector<8x16x32xbf16>
    %3 = vector.extract_strided_slice %0 {offsets = [0, 2, 0], sizes = [8, 16, 32], strides = [1, 1, 1]} : vector<8x20x32xbf16> to vector<8x16x32xbf16>
    %4 = vector.extract_strided_slice %0 {offsets = [0, 3, 0], sizes = [8, 16, 32], strides = [1, 1, 1]} : vector<8x20x32xbf16> to vector<8x16x32xbf16>
    %5 = vector.extract_strided_slice %0 {offsets = [0, 4, 0], sizes = [8, 16, 32], strides = [1, 1, 1]} : vector<8x20x32xbf16> to vector<8x16x32xbf16>
    %6 = tpu.concatenate %1, %2, %3, %4, %5 in 2 : vector<8x16x32xbf16>, vector<8x16x32xbf16>, vector<8x16x32xbf16>, vector<8x16x32xbf16>, vector<8x16x32xbf16> -> vector<8x16x160xbf16>
    %7 = vector.shape_cast %6 : vector<8x16x160xbf16> to vector<128x160xbf16>
    %c0_2 = arith.constant 0 : index
    %c0_3 = arith.constant 0 : index
    %8 = vector.load %arg2[%c0_2, %c0_3] : memref<160x128xbf16, #tpu.memory_space<vmem>>, vector<160x128xbf16>
    %cst = arith.constant dense<0.000000e+00> : vector<128x128xf32>
    %9 = tpu.matmul %7, %8, %cst {dimension_numbers = #tpu.dot_dimension_numbers<[1], [0], [0], [1], [0, 0, 1, 1], [], []>} : vector<128x160xbf16>, vector<160x128xbf16>, vector<128x128xf32> -> vector<128x128xf32>
    %10 = vector.shape_cast %9 : vector<128x128xf32> to vector<8x16x128xf32>
    %11 = tpu.iota {dimensions = array<i32: 1>} : vector<8x16x128xi32>
    %c12_i32 = arith.constant 12 : i32
    %12 = vector.broadcast %c12_i32 : i32 to vector<8x16x128xi32>
    %13 = arith.cmpi slt, %11, %12 : vector<8x16x128xi32>
    %cst_4 = arith.constant 0xFF800000 : f32
    %14 = vector.broadcast %cst_4 : f32 to vector<8x16x128xf32>
    %15 = arith.select %13, %10, %14 : vector<8x16x128xi1>, vector<8x16x128xf32>
    %cst_5 = arith.constant dense<0xFF800000> : vector<8x128xf32>
    %16 = vector.multi_reduction <maximumf>, %15, %cst_5 [1] : vector<8x16x128xf32> to vector<8x128xf32>
    %c0_6 = arith.constant 0 : index
    %c0_7 = arith.constant 0 : index
    %17 = vector.load %arg3[%c0_6, %c0_7] : memref<1x128xf32, #tpu.memory_space<vmem>>, vector<1x128xf32>
    %18 = vector.broadcast %17 : vector<1x128xf32> to vector<8x128xf32>
    %19 = arith.addf %16, %18 : vector<8x128xf32>
    %cst_8 = arith.constant 0.000000e+00 : f32
    %20 = vector.broadcast %cst_8 : f32 to vector<8x128xf32>
    %21 = arith.maximumf %19, %20 : vector<8x128xf32>
    %c0_9 = arith.constant 0 : index
    %c0_10 = arith.constant 0 : index
    %22 = vector.load %arg4[%c0_9, %c0_10] : memref<8x128xf32, #tpu.memory_space<vmem>>, vector<8x128xf32>
    tpu.vector_store %arg4[%c0_9, %c0_10], %21 {strides = array<i32>} : memref<8x128xf32, #tpu.memory_space<vmem>>, vector<8x128xf32>,
    return
  }
  func.func @transform_0(%arg0: i32) -> (i32, i32, i32) {
    %c0_i32 = arith.constant 0 : i32
    %c0_i32_0 = arith.constant 0 : i32
    %c0_i32_1 = arith.constant 0 : i32
    return %arg0, %c0_i32, %c0_i32_0 : i32, i32, i32
  }
  func.func @transform_1(%arg0: i32) -> (i32, i32) {
    %c0_i32 = arith.constant 0 : i32
    %c0_i32_0 = arith.constant 0 : i32
    %c0_i32_1 = arith.constant 0 : i32
    return %c0_i32, %c0_i32_0 : i32, i32
  }
  func.func @transform_2(%arg0: i32) -> (i32, i32) {
    %c0_i32 = arith.constant 0 : i32
    %c0_i32_0 = arith.constant 0 : i32
    %c0_i32_1 = arith.constant 0 : i32
    return %c0_i32, %c0_i32_0 : i32, i32
  }
  func.func @transform_3(%arg0: i32) -> (i32, i32) {
    %c0_i32 = arith.constant 0 : i32
    %c0_i32_0 = arith.constant 0 : i32
    return %arg0, %c0_i32 : i32, i32
  }
}

</mosaic_0001>

<llo_original>
// kernel: tpu_custom_call.1
$region0: #{tpu_custom_call.1}
  #allocation0 [shape = 'u32[]', space=smem, size = 0x4, offset = 0x4, fixed_abs, tag = 'smem constant byte address 0x4 - core index']
  #allocation1 [shape = 'u32[144,128]{1,0:T(1,128)}', space=vmem, size = 0x12000, scoped, tag = 'internal scratch']
  %s0 = inlined_call_operand.vmem [shape: bf16[16,20,32], index: 0, kind: input, shape index: {}]
  %s1 = inlined_call_operand.vmem [shape: bf16[160,128], index: 1, kind: input, shape index: {}]
  %s2 = inlined_call_operand.vmem [shape: f32[1,128], index: 2, kind: input, shape index: {}]
  %s3 = inlined_call_operand.hbm [shape: f32[16,128], index: 3, kind: output, shape index: {}]
  %s4 = sld [smem:[#allocation0]]
  $region45: #{tpu_custom_call.1} parent=0
    _
  %s6 = ssub.s32 1, %s4
  %s7 = scalar_select 0, %s6, %s4
  $region1: #{tpu_custom_call.1} parent=0
    #allocation2 [shape = 'u8[8192]{0}', space=vmem, size = 0x2000, scoped, tag = 'output window, operand 0']
    #allocation3 [shape = 's32[2]{0}', space=sflag, size = 0x8, scoped, tag = 'scoped memory for tpu_custom_call.1']
    %8 = vsyncpa [#allocation3], 0
    %s9 = scalar_lea.sflag [#allocation3], 1
    %10 = vsyncpa %s9, 0
    loop: start=0, step=1, limit=4
    $region2: #{tpu_custom_call.1} parent=1 // loop_pre_header
      _
    $region3: #{tpu_custom_call.1} parent=1 // loop_header
      %s12 = sphi 0, %s16
      %p13 = scmp.ge.s32.totalorder %s12, 4
      %s22 = sphi 0, %s24
      %s25 = sphi 0, %s22
      %s26 = sphi 0, %s25
      %s42 = sphi 0, %s26
      %s46 = sphi 0, %s46
      %s48 = sphi 0, %s46
      %s49 = sphi 0, %s48
      %s63 = sphi 0, %s49
      %s67 = sphi 0, %s67
      %s69 = sphi 0, %s67
      %s70 = sphi 0, %s69
      %s84 = sphi 0, %s70
      %s90 = sphi 0, %s92
      %s93 = sphi 0, %s90
      %s94 = sphi 0, %s93
      %s110 = sphi 0, %s94
    $region4: #{tpu_custom_call.1} parent=1 // loop_header_branch
      %15 = sbr.rel (%p13) target = $region8
    $region5: #{tpu_custom_call.1} parent=1 // loop_body
      %s17 = ssub.s32 %s12, 1
      %s18 = ssub.s32 %s12, 2
      %s19 = sadd.s32 %s12, 1
      %s20 = ssub.s32 %s12, %s19
      %p21 = scmp.eq.s32.totalorder %s20, 0
      %s23 = sadd.s32 %s22, 1
      %s24 = scalar_select %p21, %s22, %s23
      %p27 = pneg %p21
      %p28 = scmp.eq.s32.totalorder %s12, 1
      %p29 = por %p27, %p28
      %p30 = scmp.ne.s32.totalorder %s22, %s25
      %p31 = scmp.eq.s32.totalorder %s12, 0
      %p32 = por %p30, %p31
      %p33 = scmp.ne.s32.totalorder %s22, %s25
      %p34 = scmp.eq.s32.totalorder %s17, 1
      %p35 = por %p33, %p34
      %p36 = scmp.ne.s32.totalorder %s25, %s26
      %p37 = scmp.eq.s32.totalorder %s17, 0
      %p38 = por %p36, %p37
      %p39 = scmp.ne.s32.totalorder %s25, %s26
      %p40 = scmp.eq.s32.totalorder %s18, 1
      %p41 = por %p39, %p40
      %p43 = scmp.ne.s32.totalorder %s26, %s42
      %p44 = scmp.eq.s32.totalorder %s18, 0
      %p45 = por %p43, %p44
      %s47 = sadd.s32 %s46, 1
      %p50 = scmp.eq.s32.totalorder %s12, 1
      %p51 = scmp.ne.s32.totalorder %s46, %s48
      %p52 = scmp.eq.s32.totalorder %s12, 0
      %p53 = por %p51, %p52
      %p54 = scmp.ne.s32.totalorder %s46, %s48
      %p55 = scmp.eq.s32.totalorder %s17, 1
      %p56 = por %p54, %p55
      %p57 = scmp.ne.s32.totalorder %s48, %s49
      %p58 = scmp.eq.s32.totalorder %s17, 0
      %p59 = por %p57, %p58
      %p60 = scmp.ne.s32.totalorder %s48, %s49
      %p61 = scmp.eq.s32.totalorder %s18, 1
      %p62 = por %p60, %p61
      %p64 = scmp.ne.s32.totalorder %s49, %s63
      %p65 = scmp.eq.s32.totalorder %s18, 0
      %p66 = por %p64, %p65
      %s68 = sadd.s32 %s67, 1
      %p71 = scmp.eq.s32.totalorder %s12, 1
      %p72 = scmp.ne.s32.totalorder %s67, %s69
      %p73 = scmp.eq.s32.totalorder %s12, 0
      %p74 = por %p72, %p73
      %p75 = scmp.ne.s32.totalorder %s67, %s69
      %p76 = scmp.eq.s32.totalorder %s17, 1
      %p77 = por %p75, %p76
      %p78 = scmp.ne.s32.totalorder %s69, %s70
      %p79 = scmp.eq.s32.totalorder %s17, 0
      %p80 = por %p78, %p79
      %p81 = scmp.ne.s32.totalorder %s69, %s70
      %p82 = scmp.eq.s32.totalorder %s18, 1
      %p83 = por %p81, %p82
      %p85 = scmp.ne.s32.totalorder %s70, %s84
      %p86 = scmp.eq.s32.totalorder %s18, 0
      %p87 = por %p85, %p86
      %s88 = ssub.s32 %s12, %s19
      %p89 = scmp.eq.s32.totalorder %s88, 0
      %s91 = sadd.s32 %s90, 1
      %s92 = scalar_select %p89, %s90, %s91
      %p95 = pneg %p89
      %p96 = scmp.eq.s32.totalorder %s12, 1
      %p97 = por %p95, %p96
      %p98 = scmp.ne.s32.totalorder %s90, %s93
      %p99 = scmp.eq.s32.totalorder %s12, 0
      %p100 = por %p98, %p99
      %p101 = scmp.ne.s32.totalorder %s90, %s93
      %p102 = scmp.eq.s32.totalorder %s17, 1
      %p103 = por %p101, %p102
      %p104 = scmp.ne.s32.totalorder %s93, %s94
      %p105 = scmp.eq.s32.totalorder %s17, 0
      %p106 = por %p104, %p105
      %p107 = scmp.ne.s32.totalorder %s93, %s94
      %p108 = scmp.eq.s32.totalorder %s18, 1
      %p109 = por %p107, %p108
      %p111 = scmp.ne.s32.totalorder %s94, %s110
      %p112 = scmp.eq.s32.totalorder %s18, 0
      %p113 = por %p111, %p112
      %p114 = scmp.le.s32.totalorder 1, %s12
      %p115 = scmp.lt.s32.totalorder %s12, 3
      %p116 = pnand %p114, %p115
      %p117 = pneg %p116
      // Predicated region
      $region9: #{tpu_custom_call.1} parent=5 // pred_check
        _
      $region10: #{tpu_custom_call.1} parent=5 // pred_check_branch
        %119 = sbr.rel (%p116) target = $region12
      $region11: #{tpu_custom_call.1} parent=5 // pred_region
        %s120 = ssub.s32 %s12, 1
        // Predicated region
        $region13: #{tpu_custom_call.1} parent=11 // pred_check
          %p121 = pneg %p59
        $region14: #{tpu_custom_call.1} parent=11 // pred_check_branch
          %123 = sbr.rel (%p121) target = $region16
        $region15: #{tpu_custom_call.1} parent=11 // pred_region
          _
        $region16: #{tpu_custom_call.1} parent=11 // pred_fallthru
          _
        // Predicated region
        $region17: #{tpu_custom_call.1} parent=11 // pred_check
          %p124 = pneg %p80
        $region18: #{tpu_custom_call.1} parent=11 // pred_check_branch
          %126 = sbr.rel (%p124) target = $region20
        $region19: #{tpu_custom_call.1} parent=11 // pred_region
          _
        $region20: #{tpu_custom_call.1} parent=11 // pred_fallthru
          _
      $region12: #{tpu_custom_call.1} parent=5 // pred_fallthru
        _
      %p127 = scmp.lt.s32.totalorder %s12, 2
      // Predicated region
      $region21: #{tpu_custom_call.1} parent=5 // pred_check
        %p128 = pneg %p127
      $region22: #{tpu_custom_call.1} parent=5 // pred_check_branch
        %130 = sbr.rel (%p128) target = $region24
      $region23: #{tpu_custom_call.1} parent=5 // pred_region
        // Predicated region
        $region25: #{tpu_custom_call.1} parent=23 // pred_check
          %p131 = pneg %p32
        $region26: #{tpu_custom_call.1} parent=23 // pred_check_branch
          %133 = sbr.rel (%p131) target = $region28
        $region27: #{tpu_custom_call.1} parent=23 // pred_region
          %s134 = smul.u32 8, %s12
          %p135 = scmp.lt.s32.totalorder %s134, 15
          %s136 = scalar_select %p135, %s134, 15
          %s137 = smul.addr %s136, 3
          %s138 = smul.addr %s137, 4
          %s139 = scalar_lea.vmem %s0, %s138
          %s140 = smul.u32 8, %s12
        $region28: #{tpu_custom_call.1} parent=23 // pred_fallthru
          _
      $region24: #{tpu_custom_call.1} parent=5 // pred_fallthru
        _
      %p141 = scmp.le.s32.totalorder 1, %s12
      %p142 = scmp.lt.s32.totalorder %s12, 3
      %p143 = pnand %p141, %p142
      %p144 = pneg %p143
      // Predicated region
      $region29: #{tpu_custom_call.1} parent=5 // pred_check
        _
      $region30: #{tpu_custom_call.1} parent=5 // pred_check_branch
        %146 = sbr.rel (%p143) target = $region32
      $region31: #{tpu_custom_call.1} parent=5 // pred_region
        %s147 = ssub.s32 %s12, 1
        %s148 = smul.u32 8, %s17
        %p149 = scmp.lt.s32.totalorder %s148, 15
        %s150 = scalar_select %p149, %s148, 15
        %s151 = smul.addr %s150, 3
        %s152 = smul.addr %s151, 4
        %s153 = scalar_lea.vmem %s0, %s152
        %p154 = pneg %p38
        %p155 = pneg %p35
        %p156 = pneg %p59
        %p157 = pneg %p56
        %p158 = pneg %p80
        %p159 = pneg %p77
        %p160 = pneg %p106
        %p161 = pneg %p103
        %s162 = sand.u32 %s93, 1
        %s163 = scalar_lea.sflag [#allocation3], %s162
        %s164 = sand.u32 %s93, 1
        %s165 = smul.addr %s164, 8
        %s166 = scalar_lea.vmem [#allocation2], %s165
        %s167 = smul.u32 8, %s17
        %p168 = scmp.lt.s32.totalorder %s167, 15
        %s169 = scalar_select %p168, %s167, 15
        %s170 = smul.addr %s169, 3
        %s171 = smul.addr %s170, 4
        %s172 = scalar_lea.vmem %s0, %s171
        %s173 = smul.u32 8, %s17
        %v175 = vld [vmem:[%s172] sm:$0xf]
        %v176 = vld [vmem:[%s172 + $0x4] sm:$0xf]
        %v177 = vld [vmem:[%s172 + $0x8] sm:$0x3]
        %v178 = vld [vmem:[%s172 + $0xc] sm:$0xf]
        %v179 = vld [vmem:[%s172 + $0x10] sm:$0xf]
        %v180 = vld [vmem:[%s172 + $0x14] sm:$0x3]
        %v181 = vld [vmem:[%s172 + $0x18] sm:$0xf]
        %v182 = vld [vmem:[%s172 + $0x1c] sm:$0xf]
        %v183 = vld [vmem:[%s172 + $0x20] sm:$0x3]
        %v184 = vld [vmem:[%s172 + $0x24] sm:$0xf]
        %v185 = vld [vmem:[%s172 + $0x28] sm:$0xf]
        %v186 = vld [vmem:[%s172 + $0x2c] sm:$0x3]
        %v187 = vld [vmem:[%s172 + $0x30] sm:$0xf]
        %v188 = vld [vmem:[%s172 + $0x34] sm:$0xf]
        %v189 = vld [vmem:[%s172 + $0x38] sm:$0x3]
        %v190 = vld [vmem:[%s172 + $0x3c] sm:$0xf]
        %v191 = vld [vmem:[%s172 + $0x40] sm:$0xf]
        %v192 = vld [vmem:[%s172 + $0x44] sm:$0x3]
        %v193 = vld [vmem:[%s172 + $0x48] sm:$0xf]
        %v194 = vld [vmem:[%s172 + $0x4c] sm:$0xf]
        %v195 = vld [vmem:[%s172 + $0x50] sm:$0x3]
        %v196 = vld [vmem:[%s172 + $0x54] sm:$0xf]
        %v197 = vld [vmem:[%s172 + $0x58] sm:$0xf]
        %v198 = vld [vmem:[%s172 + $0x5c] sm:$0x3]
        %v215 = vunpack.c.l.b16 %v175
        %v216 = vunpack.c.l.b16 %v176
        %v217 = vunpack.c.l.b16 %v178
        %v218 = vunpack.c.l.b16 %v179
        %v219 = vunpack.c.l.b16 %v181
        %v220 = vunpack.c.l.b16 %v182
        %v221 = vunpack.c.l.b16 %v184
        %v222 = vunpack.c.l.b16 %v185
        %v223 = vunpack.c.l.b16 %v187
        %v224 = vunpack.c.l.b16 %v188
        %v225 = vunpack.c.l.b16 %v190
        %v226 = vunpack.c.l.b16 %v191
        %v227 = vunpack.c.l.b16 %v193
        %v228 = vunpack.c.l.b16 %v194
        %v229 = vunpack.c.l.b16 %v196
        %v230 = vunpack.c.l.b16 %v197
        %v231 = vpack.c.b16 %v216, %v215
        %v232 = vpack.c.b16 %v218, %v217
        %v233 = vpack.c.b16 %v220, %v219
        %v234 = vpack.c.b16 %v222, %v221
        %v235 = vpack.c.b16 %v224, %v223
        %v236 = vpack.c.b16 %v226, %v225
        %v237 = vpack.c.b16 %v228, %v227
        %v238 = vpack.c.b16 %v230, %v229
        %v247 = vunpack.c.l.b16 %v177
        %v248 = vunpack.c.l.b16 %v180
        %v249 = vunpack.c.l.b16 %v183
        %v250 = vunpack.c.l.b16 %v186
        %v251 = vunpack.c.l.b16 %v189
        %v252 = vunpack.c.l.b16 %v192
        %v253 = vunpack.c.l.b16 %v195
        %v254 = vunpack.c.l.b16 %v198
        %v255 = vpack.c.b16 %v247, %v247
        %v256 = vpack.c.b16 %v248, %v248
        %v257 = vpack.c.b16 %v249, %v249
        %v258 = vpack.c.b16 %v250, %v250
        %v259 = vpack.c.b16 %v251, %v251
        %v260 = vpack.c.b16 %v252, %v252
        %v261 = vpack.c.b16 %v253, %v253
        %v262 = vpack.c.b16 %v254, %v254
        %vm263 = vsmask.f32 7424
        %v265 = vshrl.u32 %v231, 16
        %v267 = vshll.u32 %v231, 16
        %v269 = vrot.slane %v267, 1
        %v270 = vor.u32 %v265, %v269
        %v272 = vshll.u32 %v255, 16
        %v274 = vrot.slane %v272, 1
        %v275 = vsel %vm263, %v270, %v274
        %v277 = vshrl.u32 %v232, 16
        %v279 = vshll.u32 %v232, 16
        %v281 = vrot.slane %v279, 1
        %v282 = vor.u32 %v277, %v281
        %v284 = vshll.u32 %v256, 16
        %v286 = vrot.slane %v284, 1
        %v287 = vsel %vm263, %v282, %v286
        %v289 = vshrl.u32 %v233, 16
        %v291 = vshll.u32 %v233, 16
        %v293 = vrot.slane %v291, 1
        %v294 = vor.u32 %v289, %v293
        %v296 = vshll.u32 %v257, 16
        %v298 = vrot.slane %v296, 1
        %v299 = vsel %vm263, %v294, %v298
        %v301 = vshrl.u32 %v234, 16
        %v303 = vshll.u32 %v234, 16
        %v305 = vrot.slane %v303, 1
        %v306 = vor.u32 %v301, %v305
        %v308 = vshll.u32 %v258, 16
        %v310 = vrot.slane %v308, 1
        %v311 = vsel %vm263, %v306, %v310
        %v313 = vshrl.u32 %v235, 16
        %v315 = vshll.u32 %v235, 16
        %v317 = vrot.slane %v315, 1
        %v318 = vor.u32 %v313, %v317
        %v320 = vshll.u32 %v259, 16
        %v322 = vrot.slane %v320, 1
        %v323 = vsel %vm263, %v318, %v322
        %v325 = vshrl.u32 %v236, 16
        %v327 = vshll.u32 %v236, 16
        %v329 = vrot.slane %v327, 1
        %v330 = vor.u32 %v325, %v329
        %v332 = vshll.u32 %v260, 16
        %v334 = vrot.slane %v332, 1
        %v335 = vsel %vm263, %v330, %v334
        %v337 = vshrl.u32 %v237, 16
        %v339 = vshll.u32 %v237, 16
        %v341 = vrot.slane %v339, 1
        %v342 = vor.u32 %v337, %v341
        %v344 = vshll.u32 %v261, 16
        %v346 = vrot.slane %v344, 1
        %v347 = vsel %vm263, %v342, %v346
        %v349 = vshrl.u32 %v238, 16
        %v351 = vshll.u32 %v238, 16
        %v353 = vrot.slane %v351, 1
        %v354 = vor.u32 %v349, %v353
        %v356 = vshll.u32 %v262, 16
        %v358 = vrot.slane %v356, 1
        %v359 = vsel %vm263, %v354, %v358
        %360 = vrot.lane.b32.xlu0 %v275, 32
        %v361 = vpop.permute.xlu0 %360
        %362 = vrot.lane.b32.xlu0 %v287, 32
        %v363 = vpop.permute.xlu0 %362
        %364 = vrot.lane.b32.xlu0 %v299, 32
        %v365 = vpop.permute.xlu0 %364
        %366 = vrot.lane.b32.xlu0 %v311, 32
        %v367 = vpop.permute.xlu0 %366
        %368 = vrot.lane.b32.xlu0 %v323, 32
        %v369 = vpop.permute.xlu0 %368
        %370 = vrot.lane.b32.xlu0 %v335, 32
        %v371 = vpop.permute.xlu0 %370
        %372 = vrot.lane.b32.xlu0 %v347, 32
        %v373 = vpop.permute.xlu0 %372
        %374 = vrot.lane.b32.xlu0 %v359, 32
        %v375 = vpop.permute.xlu0 %374
        %vm376 = vcmask 1046528
        %v377 = vrot.slane %v231, 1
        %v378 = vrot.slane %v255, 1
        %v379 = vsel %vm376, %v377, %v378
        %v380 = vrot.slane %v232, 1
        %v381 = vrot.slane %v256, 1
        %v382 = vsel %vm376, %v380, %v381
        %v383 = vrot.slane %v233, 1
        %v384 = vrot.slane %v257, 1
        %v385 = vsel %vm376, %v383, %v384
        %v386 = vrot.slane %v234, 1
        %v387 = vrot.slane %v258, 1
        %v388 = vsel %vm376, %v386, %v387
        %v389 = vrot.slane %v235, 1
        %v390 = vrot.slane %v259, 1
        %v391 = vsel %vm376, %v389, %v390
        %v392 = vrot.slane %v236, 1
        %v393 = vrot.slane %v260, 1
        %v394 = vsel %vm376, %v392, %v393
        %v395 = vrot.slane %v237, 1
        %v396 = vrot.slane %v261, 1
        %v397 = vsel %vm376, %v395, %v396
        %v398 = vrot.slane %v238, 1
        %v399 = vrot.slane %v262, 1
        %v400 = vsel %vm376, %v398, %v399
        %401 = vrot.lane.b32.xlu0 %v379, 64
        %v402 = vpop.permute.xlu0 %401
        %403 = vrot.lane.b32.xlu0 %v382, 64
        %v404 = vpop.permute.xlu0 %403
        %405 = vrot.lane.b32.xlu0 %v385, 64
        %v406 = vpop.permute.xlu0 %405
        %407 = vrot.lane.b32.xlu0 %v388, 64
        %v408 = vpop.permute.xlu0 %407
        %409 = vrot.lane.b32.xlu0 %v391, 64
        %v410 = vpop.permute.xlu0 %409
        %411 = vrot.lane.b32.xlu0 %v394, 64
        %v412 = vpop.permute.xlu0 %411
        %413 = vrot.lane.b32.xlu0 %v397, 64
        %v414 = vpop.permute.xlu0 %413
        %415 = vrot.lane.b32.xlu0 %v400, 64
        %v416 = vpop.permute.xlu0 %415
        %vm417 = vsmask.f32 6400
        %v418 = vrot.slane %v265, 1
        %v419 = vrot.slane %v267, 2
        %v420 = vor.u32 %v418, %v419
        %v421 = vshrl.u32 %v255, 16
        %v423 = vrot.slane %v421, 1
        %v424 = vrot.slane %v272, 2
        %v425 = vor.u32 %v423, %v424
        %v426 = vsel %vm417, %v420, %v425
        %v427 = vrot.slane %v277, 1
        %v428 = vrot.slane %v279, 2
        %v429 = vor.u32 %v427, %v428
        %v430 = vshrl.u32 %v256, 16
        %v432 = vrot.slane %v430, 1
        %v433 = vrot.slane %v284, 2
        %v434 = vor.u32 %v432, %v433
        %v435 = vsel %vm417, %v429, %v434
        %v436 = vrot.slane %v289, 1
        %v437 = vrot.slane %v291, 2
        %v438 = vor.u32 %v436, %v437
        %v439 = vshrl.u32 %v257, 16
        %v441 = vrot.slane %v439, 1
        %v442 = vrot.slane %v296, 2
        %v443 = vor.u32 %v441, %v442
        %v444 = vsel %vm417, %v438, %v443
        %v445 = vrot.slane %v301, 1
        %v446 = vrot.slane %v303, 2
        %v447 = vor.u32 %v445, %v446
        %v448 = vshrl.u32 %v258, 16
        %v450 = vrot.slane %v448, 1
        %v451 = vrot.slane %v308, 2
        %v452 = vor.u32 %v450, %v451
        %v453 = vsel %vm417, %v447, %v452
        %v454 = vrot.slane %v313, 1
        %v455 = vrot.slane %v315, 2
        %v456 = vor.u32 %v454, %v455
        %v457 = vshrl.u32 %v259, 16
        %v459 = vrot.slane %v457, 1
        %v460 = vrot.slane %v320, 2
        %v461 = vor.u32 %v459, %v460
        %v462 = vsel %vm417, %v456, %v461
        %v463 = vrot.slane %v325, 1
        %v464 = vrot.slane %v327, 2
        %v465 = vor.u32 %v463, %v464
        %v466 = vshrl.u32 %v260, 16
        %v468 = vrot.slane %v466, 1
        %v469 = vrot.slane %v332, 2
        %v470 = vor.u32 %v468, %v469
        %v471 = vsel %vm417, %v465, %v470
        %v472 = vrot.slane %v337, 1
        %v473 = vrot.slane %v339, 2
        %v474 = vor.u32 %v472, %v473
        %v475 = vshrl.u32 %v261, 16
        %v477 = vrot.slane %v475, 1
        %v478 = vrot.slane %v344, 2
        %v479 = vor.u32 %v477, %v478
        %v480 = vsel %vm417, %v474, %v479
        %v481 = vrot.slane %v349, 1
        %v482 = vrot.slane %v351, 2
        %v483 = vor.u32 %v481, %v482
        %v484 = vshrl.u32 %v262, 16
        %v486 = vrot.slane %v484, 1
        %v487 = vrot.slane %v356, 2
        %v488 = vor.u32 %v486, %v487
        %v489 = vsel %vm417, %v483, %v488
        %490 = vrot.lane.b32.xlu0 %v426, 96
        %v491 = vpop.permute.xlu0 %490
        %492 = vrot.lane.b32.xlu0 %v435, 96
        %v493 = vpop.permute.xlu0 %492
        %494 = vrot.lane.b32.xlu0 %v444, 96
        %v495 = vpop.permute.xlu0 %494
        %496 = vrot.lane.b32.xlu0 %v453, 96
        %v497 = vpop.permute.xlu0 %496
        %498 = vrot.lane.b32.xlu0 %v462, 96
        %v499 = vpop.permute.xlu0 %498
        %500 = vrot.lane.b32.xlu0 %v471, 96
        %v501 = vpop.permute.xlu0 %500
        %502 = vrot.lane.b32.xlu0 %v480, 96
        %v503 = vpop.permute.xlu0 %502
        %504 = vrot.lane.b32.xlu0 %v489, 96
        %v505 = vpop.permute.xlu0 %504
        %vm506 = vcmask 1045504
        %v507 = vrot.slane %v231, 2
        %v508 = vrot.slane %v255, 2
        %v509 = vsel %vm506, %v507, %v508
        %v510 = vrot.slane %v232, 2
        %v511 = vrot.slane %v256, 2
        %v512 = vsel %vm506, %v510, %v511
        %v513 = vrot.slane %v233, 2
        %v514 = vrot.slane %v257, 2
        %v515 = vsel %vm506, %v513, %v514
        %v516 = vrot.slane %v234, 2
        %v517 = vrot.slane %v258, 2
        %v518 = vsel %vm506, %v516, %v517
        %v519 = vrot.slane %v235, 2
        %v520 = vrot.slane %v259, 2
        %v521 = vsel %vm506, %v519, %v520
        %v522 = vrot.slane %v236, 2
        %v523 = vrot.slane %v260, 2
        %v524 = vsel %vm506, %v522, %v523
        %v525 = vrot.slane %v237, 2
        %v526 = vrot.slane %v261, 2
        %v527 = vsel %vm506, %v525, %v526
        %v528 = vrot.slane %v238, 2
        %v529 = vrot.slane %v262, 2
        %v530 = vsel %vm506, %v528, %v529
        %vm531 = vcmask 261120
        %v533 = vsel %vm531, %v231, %v361
        %v535 = vsel %vm531, %v232, %v363
        %v537 = vsel %vm531, %v233, %v365
        %v539 = vsel %vm531, %v234, %v367
        %v541 = vsel %vm531, %v235, %v369
        %v543 = vsel %vm531, %v236, %v371
        %v545 = vsel %vm531, %v237, %v373
        %v547 = vsel %vm531, %v238, %v375
        %vm548 = vcmask 523264
        %v550 = vsel %vm548, %v533, %v402
        %v552 = vsel %vm548, %v535, %v404
        %v554 = vsel %vm548, %v537, %v406
        %v556 = vsel %vm548, %v539, %v408
        %v558 = vsel %vm548, %v541, %v410
        %v560 = vsel %vm548, %v543, %v412
        %v562 = vsel %vm548, %v545, %v414
        %v564 = vsel %vm548, %v547, %v416
        %vm565 = vcmask 785408
        %v567 = vsel %vm565, %v550, %v491
        %v570 = vsel %vm565, %v552, %v493
        %v573 = vsel %vm565, %v554, %v495
        %v576 = vsel %vm565, %v556, %v497
        %v579 = vsel %vm565, %v558, %v499
        %v582 = vsel %vm565, %v560, %v501
        %v585 = vsel %vm565, %v562, %v503
        %v588 = vsel %vm565, %v564, %v505
        %v590 = vld [vmem:[%s1] sm:$0xf]
        %v591 = vld [vmem:[%s1 + $0x4] sm:$0xf]
        %v592 = vld [vmem:[%s1 + $0x8] sm:$0xf]
        %v593 = vld [vmem:[%s1 + $0xc] sm:$0xf]
        %v594 = vld [vmem:[%s1 + $0x10] sm:$0xf]
        %v595 = vld [vmem:[%s1 + $0x14] sm:$0xf]
        %v596 = vld [vmem:[%s1 + $0x18] sm:$0xf]
        %v597 = vld [vmem:[%s1 + $0x1c] sm:$0xf]
        %v598 = vld [vmem:[%s1 + $0x20] sm:$0xf]
        %v599 = vld [vmem:[%s1 + $0x24] sm:$0xf]
        %v600 = vld [vmem:[%s1 + $0x28] sm:$0xf]
        %v601 = vld [vmem:[%s1 + $0x2c] sm:$0xf]
        %v602 = vld [vmem:[%s1 + $0x30] sm:$0xf]
        %v603 = vld [vmem:[%s1 + $0x34] sm:$0xf]
        %v604 = vld [vmem:[%s1 + $0x38] sm:$0xf]
        %v605 = vld [vmem:[%s1 + $0x3c] sm:$0xf]
        %v606 = vld [vmem:[%s1 + $0x40] sm:$0xf]
        %v607 = vld [vmem:[%s1 + $0x44] sm:$0xf]
        %v608 = vld [vmem:[%s1 + $0x48] sm:$0xf]
        %v609 = vld [vmem:[%s1 + $0x4c] sm:$0xf]
        %v630 = vunpack.c.l.b16 %v590
        %v631 = vunpack.c.l.b16 %v591
        %v632 = vunpack.c.l.b16 %v592
        %v633 = vunpack.c.l.b16 %v593
        %v634 = vunpack.c.l.b16 %v594
        %v635 = vunpack.c.l.b16 %v595
        %v636 = vunpack.c.l.b16 %v596
        %v637 = vunpack.c.l.b16 %v597
        %v638 = vunpack.c.l.b16 %v598
        %v639 = vunpack.c.l.b16 %v599
        %v640 = vunpack.c.l.b16 %v600
        %v641 = vunpack.c.l.b16 %v601
        %v642 = vunpack.c.l.b16 %v602
        %v643 = vunpack.c.l.b16 %v603
        %v644 = vunpack.c.l.b16 %v604
        %v645 = vunpack.c.l.b16 %v605
        %v646 = vunpack.c.l.b16 %v606
        %v647 = vunpack.c.l.b16 %v607
        %v648 = vunpack.c.l.b16 %v608
        %v649 = vunpack.c.l.b16 %v609
        %v650 = vpack.c.b16 %v631, %v630
        %v651 = vpack.c.b16 %v633, %v632
        %v652 = vpack.c.b16 %v635, %v634
        %v653 = vpack.c.b16 %v637, %v636
        %v654 = vpack.c.b16 %v639, %v638
        %v655 = vpack.c.b16 %v641, %v640
        %v656 = vpack.c.b16 %v643, %v642
        %v657 = vpack.c.b16 %v645, %v644
        %v658 = vpack.c.b16 %v647, %v646
        %v659 = vpack.c.b16 %v649, %v648
        %v671 = vsel %vm531, %v509, 0
        %v674 = vsel %vm531, %v512, 0
        %v677 = vsel %vm531, %v515, 0
        %v680 = vsel %vm531, %v518, 0
        %v683 = vsel %vm531, %v521, 0
        %v686 = vsel %vm531, %v524, 0
        %v689 = vsel %vm531, %v527, 0
        %v692 = vsel %vm531, %v530, 0
        %694 = vmatprep.subr.bf16.mxu0 0
        %695 = vmatpush1.bf16.msra.mxu0 %v657
        %696 = vmatprep.subr.bf16.mxu0 0
        %697 = vmatpush1.bf16.msra.mxu0 %v656
        %698 = vmatprep.subr.bf16.mxu0 0
        %699 = vmatpush1.bf16.msra.mxu0 %v655
        %700 = vmatprep.subr.bf16.mxu0 0
        %701 = vmatpush1.bf16.msra.mxu0 %v654
        %702 = vmatprep.subr.bf16.mxu0 0
        %703 = vmatpush1.bf16.msra.mxu0 %v653
        %704 = vmatprep.subr.bf16.mxu0 0
        %705 = vmatpush1.bf16.msra.mxu0 %v652
        %706 = vmatprep.subr.bf16.mxu0 0
        %707 = vmatpush1.bf16.msra.mxu0 %v651
        %708 = vmatprep.subr.bf16.mxu0 0
        %709 = vmatpush1.bf16.msra.mxu0 %v650
        %710 = vmatprep.subr.bf16.mxu0 0
        %711 = vmatpush2.bf16.msra.mxu0 0
        %712 = vmatprep.subr.bf16.mxu0 0
        %713 = vmatpush2.bf16.msra.mxu0 0
        %714 = vmatprep.subr.bf16.mxu0 0
        %715 = vmatpush2.bf16.msra.mxu0 0
        %716 = vmatprep.subr.bf16.mxu0 0
        %717 = vmatpush2.bf16.msra.mxu0 0
        %718 = vmatprep.subr.bf16.mxu0 0
        %719 = vmatpush2.bf16.msra.mxu0 0
        %720 = vmatprep.subr.bf16.mxu0 0
        %721 = vmatpush2.bf16.msra.mxu0 0
        %722 = vmatprep.subr.bf16.mxu0 0
        %723 = vmatpush2.bf16.msra.mxu0 %v659
        %724 = vmatprep.subr.bf16.mxu0 0
        %725 = vmatpush2.bf16.msra.mxu0 %v658
        %726 = vmatprep.mubr.bf16.mxu0 %v671
        %727 = vmatmul.mubr.bf16.gmra.mxu0 %v567
        %v728 = vpop.f32.mrf.mxu0
        %v729 = vadd.f32 0.0, %v728
        %v730 = vpop.f32.mrf.mxu0
        %v731 = vpop.f32.mrf.mxu0
        %v732 = vadd.f32 0.0, %v731
        %v733 = vpop.f32.mrf.mxu0
        %734 = vmatprep.mubr.bf16.mxu0 %v674
        %735 = vmatmul.mubr.bf16.gmra.mxu0 %v570
        %v736 = vpop.f32.mrf.mxu0
        %v737 = vadd.f32 0.0, %v736
        %v738 = vpop.f32.mrf.mxu0
        %v739 = vpop.f32.mrf.mxu0
        %v740 = vadd.f32 0.0, %v739
        %v741 = vpop.f32.mrf.mxu0
        %742 = vmatprep.mubr.bf16.mxu0 %v677
        %743 = vmatmul.mubr.bf16.gmra.mxu0 %v573
        %v744 = vpop.f32.mrf.mxu0
        %v745 = vadd.f32 0.0, %v744
        %v746 = vpop.f32.mrf.mxu0
        %v747 = vpop.f32.mrf.mxu0
        %v748 = vadd.f32 0.0, %v747
        %v749 = vpop.f32.mrf.mxu0
        %750 = vmatprep.mubr.bf16.mxu0 %v680
        %751 = vmatmul.mubr.bf16.gmra.mxu0 %v576
        %v752 = vpop.f32.mrf.mxu0
        %v753 = vadd.f32 0.0, %v752
        %v754 = vpop.f32.mrf.mxu0
        %v755 = vpop.f32.mrf.mxu0
        %v756 = vadd.f32 0.0, %v755
        %v757 = vpop.f32.mrf.mxu0
        %758 = vmatprep.mubr.bf16.mxu0 %v683
        %759 = vmatmul.mubr.bf16.gmra.mxu0 %v579
        %v760 = vpop.f32.mrf.mxu0
        %v761 = vadd.f32 0.0, %v760
        %v762 = vpop.f32.mrf.mxu0
        %v763 = vpop.f32.mrf.mxu0
        %v764 = vadd.f32 0.0, %v763
        %v765 = vpop.f32.mrf.mxu0
        %766 = vmatprep.mubr.bf16.mxu0 %v686
        %767 = vmatmul.mubr.bf16.gmra.mxu0 %v582
        %v768 = vpop.f32.mrf.mxu0
        %v769 = vadd.f32 0.0, %v768
        %v770 = vpop.f32.mrf.mxu0
        %v771 = vpop.f32.mrf.mxu0
        %v772 = vadd.f32 0.0, %v771
        %v773 = vpop.f32.mrf.mxu0
        %774 = vmatprep.mubr.bf16.mxu0 %v689
        %775 = vmatmul.mubr.bf16.gmra.mxu0 %v585
        %v776 = vpop.f32.mrf.mxu0
        %v777 = vadd.f32 0.0, %v776
        %v778 = vpop.f32.mrf.mxu0
        %v779 = vpop.f32.mrf.mxu0
        %v780 = vadd.f32 0.0, %v779
        %v781 = vpop.f32.mrf.mxu0
        %782 = vmatprep.mubr.bf16.mxu0 %v692
        %783 = vmatmul.mubr.bf16.gmra.mxu0 %v588
        %v784 = vpop.f32.mrf.mxu0
        %v785 = vadd.f32 0.0, %v784
        %v786 = vpop.f32.mrf.mxu0
        %v787 = vpop.f32.mrf.mxu0
        %v788 = vadd.f32 0.0, %v787
        %v789 = vpop.f32.mrf.mxu0
        %790 = vdwg.mxu0
        %v791 = vlaneseq
        %v792 = vshrl.u32 %v791, 7
        %v793 = vadd.s32 %v792, 8
        %vm794 = vcmp.lt.s32.totalorder %v792, 12
        %vm795 = vcmp.lt.s32.totalorder %v793, 12
        %v796 = vsel %vm794, %v729, -inf
        %v797 = vsel %vm795, %v732, -inf
        %v798 = vsel %vm794, %v737, -inf
        %v799 = vsel %vm795, %v740, -inf
        %v800 = vsel %vm794, %v745, -inf
        %v801 = vsel %vm795, %v748, -inf
        %v802 = vsel %vm794, %v753, -inf
        %v803 = vsel %vm795, %v756, -inf
        %v804 = vsel %vm794, %v761, -inf
        %v805 = vsel %vm795, %v764, -inf
        %v806 = vsel %vm794, %v769, -inf
        %v807 = vsel %vm795, %v772, -inf
        %v808 = vsel %vm794, %v777, -inf
        %v809 = vsel %vm795, %v780, -inf
        %v810 = vsel %vm794, %v785, -inf
        %v811 = vsel %vm795, %v788, -inf
        %v812 = vmax.f32 %v796, %v797
        %v813 = vrot.slane %v812, 4
        %v814 = vmax.f32 %v812, %v813
        %v815 = vrot.slane %v814, 2
        %v816 = vmax.f32 %v814, %v815
        %v817 = vrot.slane %v816, 1
        %v818 = vmax.f32 %v816, %v817
        %v819 = vmax.f32 %v798, %v799
        %v820 = vrot.slane %v819, 4
        %v821 = vmax.f32 %v819, %v820
        %v822 = vrot.slane %v821, 2
        %v823 = vmax.f32 %v821, %v822
        %v824 = vrot.slane %v823, 1
        %v825 = vmax.f32 %v823, %v824
        %v826 = vmax.f32 %v800, %v801
        %v827 = vrot.slane %v826, 4
        %v828 = vmax.f32 %v826, %v827
        %v829 = vrot.slane %v828, 2
        %v830 = vmax.f32 %v828, %v829
        %v831 = vrot.slane %v830, 1
        %v832 = vmax.f32 %v830, %v831
        %v833 = vmax.f32 %v802, %v803
        %v834 = vrot.slane %v833, 4
        %v835 = vmax.f32 %v833, %v834
        %v836 = vrot.slane %v835, 2
        %v837 = vmax.f32 %v835, %v836
        %v838 = vrot.slane %v837, 1
        %v839 = vmax.f32 %v837, %v838
        %v840 = vmax.f32 %v804, %v805
        %v841 = vrot.slane %v840, 4
        %v842 = vmax.f32 %v840, %v841
        %v843 = vrot.slane %v842, 2
        %v844 = vmax.f32 %v842, %v843
        %v845 = vrot.slane %v844, 1
        %v846 = vmax.f32 %v844, %v845
        %v847 = vmax.f32 %v806, %v807
        %v848 = vrot.slane %v847, 4
        %v849 = vmax.f32 %v847, %v848
        %v850 = vrot.slane %v849, 2
        %v851 = vmax.f32 %v849, %v850
        %v852 = vrot.slane %v851, 1
        %v853 = vmax.f32 %v851, %v852
        %v854 = vmax.f32 %v808, %v809
        %v855 = vrot.slane %v854, 4
        %v856 = vmax.f32 %v854, %v855
        %v857 = vrot.slane %v856, 2
        %v858 = vmax.f32 %v856, %v857
        %v859 = vrot.slane %v858, 1
        %v860 = vmax.f32 %v858, %v859
        %v861 = vmax.f32 %v810, %v811
        %v862 = vrot.slane %v861, 4
        %v863 = vmax.f32 %v861, %v862
        %v864 = vrot.slane %v863, 2
        %v865 = vmax.f32 %v863, %v864
        %v866 = vrot.slane %v865, 1
        %v867 = vmax.f32 %v865, %v866
        %v868 = vld [vmem:[%s2] sm:$0x1]
        %v870 = vlaneseq
        %v871 = vshrl.u32 %v870, 7
        %v872 = vsub.s32 0, %v871
        %v873 = vrot.slane %v868, %v872
        %v875 = vadd.f32 %v818, %v873
        %v876 = vadd.f32 %v825, %v873
        %v877 = vadd.f32 %v832, %v873
        %v878 = vadd.f32 %v839, %v873
        %v879 = vadd.f32 %v846, %v873
        %v880 = vadd.f32 %v853, %v873
        %v881 = vadd.f32 %v860, %v873
        %v882 = vadd.f32 %v867, %v873
        %v883 = vmax.f32 %v875, 0.0
        %v884 = vmax.f32 %v876, 0.0
        %v885 = vmax.f32 %v877, 0.0
        %v886 = vmax.f32 %v878, 0.0
        %v887 = vmax.f32 %v879, 0.0
        %v888 = vmax.f32 %v880, 0.0
        %v889 = vmax.f32 %v881, 0.0
        %v890 = vmax.f32 %v882, 0.0
        %v899 = vrot.slane %v884, 7
        %vm900 = vcmask 1041409
        %v901 = vsel %vm900, %v899, %v883
        %v902 = vrot.slane %v885, 6
        %vm903 = vcmask 1042434
        %v904 = vsel %vm903, %v902, %v901
        %v905 = vrot.slane %v886, 5
        %vm906 = vcmask 1043459
        %v907 = vsel %vm906, %v905, %v904
        %v908 = vrot.slane %v887, 4
        %vm909 = vcmask 1044484
        %v910 = vsel %vm909, %v908, %v907
        %v911 = vrot.slane %v888, 3
        %vm912 = vcmask 1045509
        %v913 = vsel %vm912, %v911, %v910
        %v914 = vrot.slane %v889, 2
        %vm915 = vcmask 1046534
        %v916 = vsel %vm915, %v914, %v913
        %v917 = vrot.slane %v890, 1
        %vm918 = vcmask 1047559
        %v919 = vsel %vm918, %v917, %v916
        %921 = vst [vmem:[%s166] sm:$0xff] %v919
        %s922 = sand.u32 %s93, 1
        %s923 = scalar_lea.sflag [#allocation3], %s922
        %s924 = sand.u32 %s93, 1
        %s925 = smul.addr %s924, 8
        %s926 = scalar_lea.vmem [#allocation2], %s925
        // Predicated region
        $region33: #{tpu_custom_call.1} parent=31 // pred_check
          %p927 = pneg %p103
        $region34: #{tpu_custom_call.1} parent=31 // pred_check_branch
          %929 = sbr.rel (%p927) target = $region36
        $region35: #{tpu_custom_call.1} parent=31 // pred_region
          %s931 = ssub.s32 128, 128
          %932 = vsyncadd %s923, %s931
          %s933 = smul.addr %s17, 128
          %s934 = scalar_lea.hbm %s3, %s933
          %s936 = sshll.u32 %s926, 4
          %s937 = int_to_ptr.vmem [resolvable:$true] %s936
          %939 = dma.vmem_to_hbm [thread:$0]  %s937, 128, %s934, %s923
        $region36: #{tpu_custom_call.1} parent=31 // pred_fallthru
          _
      $region32: #{tpu_custom_call.1} parent=5 // pred_fallthru
        _
      %p940 = scmp.le.s32.totalorder 2, %s12
      // Predicated region
      $region37: #{tpu_custom_call.1} parent=5 // pred_check
        %p941 = pneg %p940
      $region38: #{tpu_custom_call.1} parent=5 // pred_check_branch
        %943 = sbr.rel (%p941) target = $region40
      $region39: #{tpu_custom_call.1} parent=5 // pred_region
        %s944 = ssub.s32 %s12, 2
        // Predicated region
        $region41: #{tpu_custom_call.1} parent=39 // pred_check
          %p945 = pneg %p109
        $region42: #{tpu_custom_call.1} parent=39 // pred_check_branch
          %947 = sbr.rel (%p945) target = $region44
        $region43: #{tpu_custom_call.1} parent=39 // pred_region
          %s948 = sand.u32 %s94, 1
          %s949 = scalar_lea.sflag [#allocation3], %s948
          %s950 = sand.u32 %s94, 1
          %s951 = smul.addr %s950, 8
          %s952 = scalar_lea.vmem [#allocation2], %s951
          %953 = dma.done %s949, 128
        $region44: #{tpu_custom_call.1} parent=39 // pred_fallthru
          _
      $region40: #{tpu_custom_call.1} parent=5 // pred_fallthru
        _
    $region6: #{tpu_custom_call.1} parent=1 // loop_footer
      %s16 = sadd.s32 1, %s12
    $region7: #{tpu_custom_call.1} parent=1 // loop_footer_branch
      %11 = sbr.rel target = $region3
    $region8: #{tpu_custom_call.1} parent=1 // loop_exit
      _
    %954 = vsyncpa [#allocation3], 1
    %s955 = scalar_lea.sflag [#allocation3], 1
    %956 = vsyncpa %s955, 1

</llo_original>
